<compile_context>
chip_gen: v7x
topology: tpu7x:2x2x1
jax: 0.10.0
libtpu: 0.0.40
codegen_flags: <defaults>
</compile_context>

<pallas_src>
import functools

import jax
import jax.numpy as jnp
from jax.experimental import pallas as pl
from jax.experimental.pallas import tpu as pltpu

LANES = 128
SUBLANES = 8
MAX_TILE_ROWS = 8192     # (8192, 128) f32 = 4 MiB per input per grid step


def _loss_kernel(m_ref, y1_ref, ycal_ref, num_ref, den_ref,
                 num_acc, den_acc, *, tile_rows, valid_rows_last, needs_mask):
    j = pl.program_id(0)
    last = pl.num_programs(0) - 1

    # Reset the (8, 128) vreg accumulators at the start of the sweep.
    @pl.when(j == 0)
    def _():
        num_acc[...] = jnp.zeros_like(num_acc)
        den_acc[...] = jnp.zeros_like(den_acc)

    m = m_ref[...].astype(jnp.float32)
    y1 = y1_ref[...].astype(jnp.float32)
    ycal = ycal_ref[...].astype(jnp.float32)

    # Factored numerator: |m*ycal - y1*ycal| == |m - y1| * ycal  (ycal >= 0 not
    # required for the product form to be correct under abs of the product).
    diff = jnp.abs((m - y1) * ycal)
    den = ycal

    if needs_mask:
        # Ragged trailing block: mask the stale rows of the partial DMA so
        # undefined VMEM contents (possible NaNs) never reach the sums.
        # Trace-time branch: aligned slabs skip iota/compare/select entirely.
        limit = jnp.where(j == last, valid_rows_last, tile_rows)
        row_idx = jax.lax.broadcasted_iota(jnp.int32, (tile_rows, 1), 0)
        valid = row_idx < limit
        diff = jnp.where(valid, diff, 0.0)
        den = jnp.where(valid, den, 0.0)

    # Per-step partial sums collapse to one (8, 128) vreg via pure VPU adds —
    # no tile-shaped accumulator traffic through VMEM.
    num_acc[...] += diff.reshape(tile_rows // SUBLANES, SUBLANES, LANES).sum(axis=0)
    den_acc[...] += den.reshape(tile_rows // SUBLANES, SUBLANES, LANES).sum(axis=0)

    # One cross-lane/sublane reduction + SMEM store at the end of the sweep.
    @pl.when(j == last)
    def _():
        num_ref[0, 0] = jnp.sum(num_acc[...])
        den_ref[0, 0] = jnp.sum(den_acc[...])


def _to_slab(x):
    """Flatten to a lane-dense (rows, 128) slab with rows % 8 == 0.

    Free reshape when numel is already a multiple of 8*128 (the common case);
    zero-padding otherwise (zeros contribute exactly 0 to both sums)."""
    flat = jnp.ravel(x)
    n = flat.shape[0]
    pad = (-n) % (SUBLANES * LANES)
    if pad:
        flat = jnp.pad(flat, (0, pad))
    return flat.reshape(-1, LANES)


def my_loss(model_outputs, y1, y2p, y2d, y2cal):
    # y2p / y2d are unused by the reference forward pass (kept for API parity).
    del y2p, y2d

    m2 = _to_slab(model_outputs)
    y12 = _to_slab(y1)
    yc2 = _to_slab(y2cal)

    rows = m2.shape[0]                                   # multiple of 8
    tile_rows = min(MAX_TILE_ROWS, rows)                 # multiple of 8
    tiles_total = (rows + tile_rows - 1) // tile_rows
    valid_rows_last = rows - (tiles_total - 1) * tile_rows
    needs_mask = valid_rows_last != tile_rows            # trace-time Python bool

    kernel = functools.partial(
        _loss_kernel,
        tile_rows=tile_rows,
        valid_rows_last=valid_rows_last,
        needs_mask=needs_mask,
    )

    in_spec = pl.BlockSpec((tile_rows, LANES), lambda j: (j, 0))
    out_spec = pl.BlockSpec((1, 1), lambda j: (0, 0), memory_space=pltpu.SMEM)

    # Explicit scoped-VMEM budget: 3 inputs x 2 pipeline buffers per step.
    # Keeps 8192-row tiles legal on v5e (16 MiB default scoped VMEM) while
    # staying well under v7x's 64 MiB physical VMEM.
    bytes_per_step = 3 * tile_rows * LANES * m2.dtype.itemsize
    vmem_limit = int(max(16 << 20, min(2 * bytes_per_step + (4 << 20), 40 << 20)))

    num, den = pl.pallas_call(
        kernel,
        out_shape=(jax.ShapeDtypeStruct((1, 1), jnp.float32),
                   jax.ShapeDtypeStruct((1, 1), jnp.float32)),
        grid_spec=pltpu.PrefetchScalarGridSpec(
            num_scalar_prefetch=0,
            grid=(tiles_total,),
            in_specs=[in_spec, in_spec, in_spec],
            out_specs=(out_spec, out_spec),
            scratch_shapes=[pltpu.VMEM((SUBLANES, LANES), jnp.float32),
                            pltpu.VMEM((SUBLANES, LANES), jnp.float32)],
        ),
        compiler_params=pltpu.CompilerParams(
            dimension_semantics=("arbitrary",),
            vmem_limit_bytes=vmem_limit),
    )(m2, y12, yc2)

    # Final scalar division matches "/ y2cal.sum()" (no zero-guard, as in ref).
    return (num[0, 0] / den[0, 0]).astype(jnp.float32)


def my_loss_ref(model_outputs, y1, y2p, y2d, y2cal):
    del y2p, y2d
    num = jnp.sum(jnp.abs(model_outputs * y2cal - y1 * y2cal))
    return num / jnp.sum(y2cal)


if __name__ == "__main__":
    key = jax.random.PRNGKey(0)
    k1, k2, k3, k4, k5 = jax.random.split(key, 5)

    B, C, H, W = 2, 4, 16, 16  # NCHW, small synthetic shapes
    model_outputs = jax.random.normal(k1, (B, C, H, W), dtype=jnp.float32)
    y1 = jax.random.normal(k2, (B, C, H, W), dtype=jnp.float32)
    y2p = jax.random.normal(k3, (B, C, H, W), dtype=jnp.float32)
    y2d = jax.random.normal(k4, (B, C, H, W), dtype=jnp.float32)
    # y2cal acts as a (positive) calibration mask/weight.
    y2cal = jax.random.uniform(k5, (B, C, H, W), dtype=jnp.float32,
                               minval=0.1, maxval=1.0)

    out = my_loss(model_outputs, y1, y2p, y2d, y2cal)
    out = jax.block_until_ready(out)

    ref = my_loss_ref(model_outputs, y1, y2p, y2d, y2cal)
    assert jnp.allclose(out, ref, rtol=1e-5, atol=1e-5), (out, ref)

    print("KERNEL_OK")
</pallas_src>

<mosaic_0001>
module attributes {stable_mosaic.version = 11 : i64} {
  func.func @_loss_kernel(%arg0: i32, %arg1: memref<16x128xf32, #tpu.memory_space<vmem>>, %arg2: memref<16x128xf32, #tpu.memory_space<vmem>>, %arg3: memref<16x128xf32, #tpu.memory_space<vmem>>, %arg4: memref<1x1xf32, #tpu.memory_space<smem>>, %arg5: memref<1x1xf32, #tpu.memory_space<smem>>, %arg6: memref<8x128xf32, #tpu.memory_space<vmem>>, %arg7: memref<8x128xf32, #tpu.memory_space<vmem>>) attributes {dimension_semantics = [#tpu.dimension_semantics<arbitrary>], iteration_bounds = array<i64: 1>, scalar_prefetch = 0 : i64, scratch_operands = 2 : i64, tpu.core_type = #tpu.core_type<tc>, window_params = [{transform_indices = @transform_0, window_bounds = array<i64: 16, 128>}, {transform_indices = @transform_1, window_bounds = array<i64: 16, 128>}, {transform_indices = @transform_2, window_bounds = array<i64: 16, 128>}, {transform_indices = @transform_3, window_bounds = array<i64: 1, 1>}, {transform_indices = @transform_4, window_bounds = array<i64: 1, 1>}]} {
    %c0_i32 = arith.constant 0 : i32
    %0 = arith.cmpi eq, %arg0, %c0_i32 : i32
    %1 = arith.extui %0 : i1 to i32
    %c0_i32_0 = arith.constant 0 : i32
    %2 = arith.cmpi ne, %1, %c0_i32_0 : i32
    scf.if %2 {
      %cst_17 = arith.constant 0.000000e+00 : f32
      %22 = vector.broadcast %cst_17 : f32 to vector<8x128xf32>
      %c0_18 = arith.constant 0 : index
      %c0_19 = arith.constant 0 : index
      %23 = vector.load %arg6[%c0_18, %c0_19] : memref<8x128xf32, #tpu.memory_space<vmem>>, vector<8x128xf32>
      tpu.vector_store %arg6[%c0_18, %c0_19], %22 {strides = array<i32>} : memref<8x128xf32, #tpu.memory_space<vmem>>, vector<8x128xf32>,
      %cst_20 = arith.constant 0.000000e+00 : f32
      %24 = vector.broadcast %cst_20 : f32 to vector<8x128xf32>
      %c0_21 = arith.constant 0 : index
      %c0_22 = arith.constant 0 : index
      %25 = vector.load %arg7[%c0_21, %c0_22] : memref<8x128xf32, #tpu.memory_space<vmem>>, vector<8x128xf32>
      tpu.vector_store %arg7[%c0_21, %c0_22], %24 {strides = array<i32>} : memref<8x128xf32, #tpu.memory_space<vmem>>, vector<8x128xf32>,
    } else {
    }
    %c0 = arith.constant 0 : index
    %c0_1 = arith.constant 0 : index
    %3 = vector.load %arg1[%c0, %c0_1] : memref<16x128xf32, #tpu.memory_space<vmem>>, vector<16x128xf32>
    %c0_2 = arith.constant 0 : index
    %c0_3 = arith.constant 0 : index
    %4 = vector.load %arg2[%c0_2, %c0_3] : memref<16x128xf32, #tpu.memory_space<vmem>>, vector<16x128xf32>
    %c0_4 = arith.constant 0 : index
    %c0_5 = arith.constant 0 : index
    %5 = vector.load %arg3[%c0_4, %c0_5] : memref<16x128xf32, #tpu.memory_space<vmem>>, vector<16x128xf32>
    %6 = arith.subf %3, %4 : vector<16x128xf32>
    %7 = arith.mulf %6, %5 : vector<16x128xf32>
    %8 = math.absf %7 : vector<16x128xf32>
    %c0_6 = arith.constant 0 : index
    %c0_7 = arith.constant 0 : index
    %9 = vector.load %arg6[%c0_6, %c0_7] : memref<8x128xf32, #tpu.memory_space<vmem>>, vector<8x128xf32>
    %10 = vector.shape_cast %8 : vector<16x128xf32> to vector<2x8x128xf32>
    %cst = arith.constant dense<0.000000e+00> : vector<8x128xf32>
    %11 = vector.multi_reduction <add>, %10, %cst [0] : vector<2x8x128xf32> to vector<8x128xf32>
    %12 = arith.addf %9, %11 : vector<8x128xf32>
    %c0_8 = arith.constant 0 : index
    %c0_9 = arith.constant 0 : index
    %13 = vector.load %arg6[%c0_8, %c0_9] : memref<8x128xf32, #tpu.memory_space<vmem>>, vector<8x128xf32>
    tpu.vector_store %arg6[%c0_8, %c0_9], %12 {strides = array<i32>} : memref<8x128xf32, #tpu.memory_space<vmem>>, vector<8x128xf32>,
    %c0_10 = arith.constant 0 : index
    %c0_11 = arith.constant 0 : index
    %14 = vector.load %arg7[%c0_10, %c0_11] : memref<8x128xf32, #tpu.memory_space<vmem>>, vector<8x128xf32>
    %15 = vector.shape_cast %5 : vector<16x128xf32> to vector<2x8x128xf32>
    %cst_12 = arith.constant dense<0.000000e+00> : vector<8x128xf32>
    %16 = vector.multi_reduction <add>, %15, %cst_12 [0] : vector<2x8x128xf32> to vector<8x128xf32>
    %17 = arith.addf %14, %16 : vector<8x128xf32>
    %c0_13 = arith.constant 0 : index
    %c0_14 = arith.constant 0 : index
    %18 = vector.load %arg7[%c0_13, %c0_14] : memref<8x128xf32, #tpu.memory_space<vmem>>, vector<8x128xf32>
    tpu.vector_store %arg7[%c0_13, %c0_14], %17 {strides = array<i32>} : memref<8x128xf32, #tpu.memory_space<vmem>>, vector<8x128xf32>,
    %c0_i32_15 = arith.constant 0 : i32
    %19 = arith.cmpi eq, %arg0, %c0_i32_15 : i32
    %20 = arith.extui %19 : i1 to i32
    %c0_i32_16 = arith.constant 0 : i32
    %21 = arith.cmpi ne, %20, %c0_i32_16 : i32
    scf.if %21 {
      %c0_17 = arith.constant 0 : index
      %c0_18 = arith.constant 0 : index
      %22 = vector.load %arg6[%c0_17, %c0_18] : memref<8x128xf32, #tpu.memory_space<vmem>>, vector<8x128xf32>
      %23 = vector.shape_cast %22 : vector<8x128xf32> to vector<1x8x128xf32>
      %cst_19 = arith.constant dense<0.000000e+00> : vector<1xf32>
      %24 = vector.multi_reduction <add>, %23, %cst_19 [1, 2] : vector<1x8x128xf32> to vector<1xf32>
      %25 = vector.shape_cast %24 : vector<1xf32> to vector<1x1x1xf32>
      %26 = vector.extract %25[0, 0, 0] : f32 from vector<1x1x1xf32>
      %c0_20 = arith.constant 0 : index
      %c0_21 = arith.constant 0 : index
      %27 = memref.load %arg4[%c0_20, %c0_21] : memref<1x1xf32, #tpu.memory_space<smem>>
      memref.store %26, %arg4[%c0_20, %c0_21] : memref<1x1xf32, #tpu.memory_space<smem>>
      %c0_22 = arith.constant 0 : index
      %c0_23 = arith.constant 0 : index
      %28 = vector.load %arg7[%c0_22, %c0_23] : memref<8x128xf32, #tpu.memory_space<vmem>>, vector<8x128xf32>
      %29 = vector.shape_cast %28 : vector<8x128xf32> to vector<1x8x128xf32>
      %cst_24 = arith.constant dense<0.000000e+00> : vector<1xf32>
      %30 = vector.multi_reduction <add>, %29, %cst_24 [1, 2] : vector<1x8x128xf32> to vector<1xf32>
      %31 = vector.shape_cast %30 : vector<1xf32> to vector<1x1x1xf32>
      %32 = vector.extract %31[0, 0, 0] : f32 from vector<1x1x1xf32>
      %c0_25 = arith.constant 0 : index
      %c0_26 = arith.constant 0 : index
      %33 = memref.load %arg5[%c0_25, %c0_26] : memref<1x1xf32, #tpu.memory_space<smem>>
      memref.store %32, %arg5[%c0_25, %c0_26] : memref<1x1xf32, #tpu.memory_space<smem>>
    } else {
    }
    return
  }
  func.func @transform_0(%arg0: i32) -> (i32, i32) {
    %c0_i32 = arith.constant 0 : i32
    %c0_i32_0 = arith.constant 0 : i32
    return %arg0, %c0_i32 : i32, i32
  }
  func.func @transform_1(%arg0: i32) -> (i32, i32) {
    %c0_i32 = arith.constant 0 : i32
    %c0_i32_0 = arith.constant 0 : i32
    return %arg0, %c0_i32 : i32, i32
  }
  func.func @transform_2(%arg0: i32) -> (i32, i32) {
    %c0_i32 = arith.constant 0 : i32
    %c0_i32_0 = arith.constant 0 : i32
    return %arg0, %c0_i32 : i32, i32
  }
  func.func @transform_3(%arg0: i32) -> (i32, i32) {
    %c0_i32 = arith.constant 0 : i32
    %c0_i32_0 = arith.constant 0 : i32
    %c0_i32_1 = arith.constant 0 : i32
    return %c0_i32, %c0_i32_0 : i32, i32
  }
  func.func @transform_4(%arg0: i32) -> (i32, i32) {
    %c0_i32 = arith.constant 0 : i32
    %c0_i32_0 = arith.constant 0 : i32
    %c0_i32_1 = arith.constant 0 : i32
    return %c0_i32, %c0_i32_0 : i32, i32
  }
}

</mosaic_0001>

<llo_original>
// kernel: tpu_custom_call.1
$region0: #{tpu_custom_call.1}
  #allocation0 [shape = 'u32[]', space=smem, size = 0x4, offset = 0x4, fixed_abs, tag = 'smem constant byte address 0x4 - core index']
  #allocation1 [shape = 'u32[144,128]{1,0:T(1,128)}', space=vmem, size = 0x12000, scoped, tag = 'internal scratch']
  #allocation2 [shape = 'f32[8,128]{1,0:T(8,128)}', space=vmem, size = 0x1000, scoped, tag = 'scratch operand']
  #allocation3 [shape = 'f32[8,128]{1,0:T(8,128)}', space=vmem, size = 0x1000, scoped, tag = 'scratch operand']
  %s0 = inlined_call_operand.hbm [shape: f32[16,128], index: 0, kind: input, shape index: {}]
  %s1 = inlined_call_operand.hbm [shape: f32[16,128], index: 1, kind: input, shape index: {}]
  %s2 = inlined_call_operand.hbm [shape: f32[16,128], index: 2, kind: input, shape index: {}]
  %s3 = inlined_call_operand.hbm [shape: f32[1,1], index: 3, kind: output, shape index: {0}]
  %s4 = inlined_call_operand.hbm [shape: f32[1,1], index: 4, kind: output, shape index: {1}]
  %5 = xla_tuple %s3, %s4
  %s6 = sld [smem:[#allocation0]]
  $region50: #{tpu_custom_call.1} parent=0
    _
  %s8 = ssub.s32 1, %s6
  %s9 = scalar_select 0, %s8, %s6
  $region1: #{tpu_custom_call.1} parent=0
    #allocation4 [shape = 'u8[8192]{0}', space=vmem, size = 0x2000, scoped, tag = 'input window, operand 0, single buffered']
    #allocation5 [shape = 's32[1]{0}', space=sflag, size = 0x4, scoped, tag = 'scoped memory for tpu_custom_call.1']
    #allocation6 [shape = 's32[1]{0}', space=sflag, size = 0x4, scoped, tag = 'scoped memory for tpu_custom_call.1']
    #allocation7 [shape = 'u8[8192]{0}', space=vmem, size = 0x2000, scoped, tag = 'input window, operand 1, single buffered']
    #allocation8 [shape = 's32[1]{0}', space=sflag, size = 0x4, scoped, tag = 'scoped memory for tpu_custom_call.1']
    #allocation9 [shape = 'u8[8192]{0}', space=vmem, size = 0x2000, scoped, tag = 'input window, operand 2, single buffered']
    #allocation10 [shape = 'u8[512]{0}', space=smem, size = 0x200, scoped, tag = 'output window, operand 0, single buffered']
    #allocation11 [shape = 'u8[512]{0}', space=smem, size = 0x200, scoped, tag = 'output window, operand 1, single buffered']
    #allocation12 [shape = 's32[1]{0}', space=sflag, size = 0x4, scoped, tag = 'scoped memory for tpu_custom_call.1']
    %10 = vsyncpa [#allocation5], 0
    %11 = vsyncpa [#allocation8], 0
    %12 = vsyncpa [#allocation6], 0
    %13 = vsyncpa [#allocation12], 0
    // Predicated region
    $region2: #{tpu_custom_call.1} parent=1 // pred_check
      _
    $region3: #{tpu_custom_call.1} parent=1 // pred_check_branch
      %15 = sbr.rel (0) target = $region5
    $region4: #{tpu_custom_call.1} parent=1 // pred_region
      %s17 = ssub.s32 256, 256
      %18 = vsyncadd [#allocation5], %s17
      %s19 = sshll.u32 [#allocation4], 4
      %s20 = int_to_ptr.vmem [resolvable:$true] %s19
      %25 = dma.hbm_to_vmem [thread:$0]  %s0, 256, %s20, [#allocation5], 128, 128, 8
    $region5: #{tpu_custom_call.1} parent=1 // pred_fallthru
      _
    // Predicated region
    $region6: #{tpu_custom_call.1} parent=1 // pred_check
      _
    $region7: #{tpu_custom_call.1} parent=1 // pred_check_branch
      %27 = sbr.rel (0) target = $region9
    $region8: #{tpu_custom_call.1} parent=1 // pred_region
      %s29 = ssub.s32 256, 256
      %30 = vsyncadd [#allocation8], %s29
      %s31 = sshll.u32 [#allocation7], 4
      %s32 = int_to_ptr.vmem [resolvable:$true] %s31
      %37 = dma.hbm_to_vmem [thread:$0]  %s1, 256, %s32, [#allocation8], 128, 128, 8
    $region9: #{tpu_custom_call.1} parent=1 // pred_fallthru
      _
    // Predicated region
    $region10: #{tpu_custom_call.1} parent=1 // pred_check
      _
    $region11: #{tpu_custom_call.1} parent=1 // pred_check_branch
      %39 = sbr.rel (0) target = $region13
    $region12: #{tpu_custom_call.1} parent=1 // pred_region
      %s41 = ssub.s32 256, 256
      %42 = vsyncadd [#allocation8], %s41
      %s43 = sshll.u32 [#allocation9], 4
      %s44 = int_to_ptr.vmem [resolvable:$true] %s43
      %49 = dma.hbm_to_vmem [thread:$0]  %s2, 256, %s44, [#allocation8], 128, 128, 8
    $region13: #{tpu_custom_call.1} parent=1 // pred_fallthru
      _
    // Predicated region
    $region14: #{tpu_custom_call.1} parent=1 // pred_check
      _
    $region15: #{tpu_custom_call.1} parent=1 // pred_check_branch
      %51 = sbr.rel (0) target = $region17
    $region16: #{tpu_custom_call.1} parent=1 // pred_region
      %52 = dma.done [#allocation5], 256
    $region17: #{tpu_custom_call.1} parent=1 // pred_fallthru
      _
    // Predicated region
    $region18: #{tpu_custom_call.1} parent=1 // pred_check
      _
    $region19: #{tpu_custom_call.1} parent=1 // pred_check_branch
      %54 = sbr.rel (0) target = $region21
    $region20: #{tpu_custom_call.1} parent=1 // pred_region
      %55 = dma.done [#allocation8], 256
    $region21: #{tpu_custom_call.1} parent=1 // pred_fallthru
      _
    // Predicated region
    $region22: #{tpu_custom_call.1} parent=1 // pred_check
      _
    $region23: #{tpu_custom_call.1} parent=1 // pred_check_branch
      %57 = sbr.rel (0) target = $region25
    $region24: #{tpu_custom_call.1} parent=1 // pred_region
      %58 = dma.done [#allocation8], 256
    $region25: #{tpu_custom_call.1} parent=1 // pred_fallthru
      _
    %p59 = scmp.eq.s32.totalorder 0, 0
    // Predicated region
    $region26: #{tpu_custom_call.1} parent=1 // pred_check
      %p60 = pneg %p59
    $region27: #{tpu_custom_call.1} parent=1 // pred_check_branch
      %62 = sbr.rel (%p60) target = $region29
    $region28: #{tpu_custom_call.1} parent=1 // pred_region
      %63 = vst [vmem:[#allocation2] sm:$0xff] 0.0
      %64 = vst [vmem:[#allocation3] sm:$0xff] 0.0
    $region29: #{tpu_custom_call.1} parent=1 // pred_fallthru
      _
    %v65 = vld [vmem:[#allocation4] sm:$0xff]
    %v66 = vld [vmem:[#allocation4 + $0x8] sm:$0xff]
    %v67 = vld [vmem:[#allocation7] sm:$0xff]
    %v68 = vld [vmem:[#allocation7 + $0x8] sm:$0xff]
    %v69 = vld [vmem:[#allocation9] sm:$0xff]
    %v70 = vld [vmem:[#allocation9 + $0x8] sm:$0xff]
    %v71 = vsub.f32 %v65, %v67
    %v72 = vsub.f32 %v66, %v68
    %v73 = vmul.f32 %v71, %v69
    %v74 = vmul.f32 %v72, %v70
    %v75 = vand.u32 2147483647, %v73
    %v76 = vand.u32 2147483647, %v74
    %v77 = vld [vmem:[#allocation2] sm:$0xff]
    %v78 = vadd.f32 %v75, %v76
    %v79 = vadd.f32 %v77, %v78
    %80 = vst [vmem:[#allocation2] sm:$0xff] %v79
    %v81 = vld [vmem:[#allocation3] sm:$0xff]
    %v82 = vadd.f32 %v69, %v70
    %v83 = vadd.f32 %v81, %v82
    %84 = vst [vmem:[#allocation3] sm:$0xff] %v83
    // Predicated region
    $region30: #{tpu_custom_call.1} parent=1 // pred_check
      %p85 = pneg %p59
    $region31: #{tpu_custom_call.1} parent=1 // pred_check_branch
      %87 = sbr.rel (%p85) target = $region33
    $region32: #{tpu_custom_call.1} parent=1 // pred_region
      %v88 = vld [vmem:[#allocation2] sm:$0xff]
      %89 = vadd.xlane.f32.xlu0 %v88
      %v90 = vpop.xlane.xlu0 %89
      %v91 = vrot.slane %v90, 4
      %v92 = vadd.f32 %v90, %v91
      %v93 = vrot.slane %v92, 2
      %v94 = vadd.f32 %v92, %v93
      %v95 = vrot.slane %v94, 1
      %v96 = vadd.f32 %v94, %v95
      %s97 = vtos %v96
      %s98 = scalar_lea.smem [#allocation10], 0
      %99 = sst [smem:[%s98]] %s97
      %v100 = vld [vmem:[#allocation3] sm:$0xff]
      %101 = vadd.xlane.f32.xlu0 %v100
      %v102 = vpop.xlane.xlu0 %101
      %v103 = vrot.slane %v102, 4
      %v104 = vadd.f32 %v102, %v103
      %v105 = vrot.slane %v104, 2
      %v106 = vadd.f32 %v104, %v105
      %v107 = vrot.slane %v106, 1
      %v108 = vadd.f32 %v106, %v107
      %s109 = vtos %v108
      %s110 = scalar_lea.smem [#allocation11], 0
      %111 = sst [smem:[%s110]] %s109
    $region33: #{tpu_custom_call.1} parent=1 // pred_fallthru
      _
    // Predicated region
    $region34: #{tpu_custom_call.1} parent=1 // pred_check
      _
    $region35: #{tpu_custom_call.1} parent=1 // pred_check_branch
      %113 = sbr.rel (0) target = $region37
    $region36: #{tpu_custom_call.1} parent=1 // pred_region
      %s115 = ssub.s32 16, 16
      %116 = vsyncadd [#allocation6], %s115
      %119 = dma.smem_to_hbm [#allocation10], 16, %s3, [#allocation6]
    $region37: #{tpu_custom_call.1} parent=1 // pred_fallthru
      _
    // Predicated region
    $region38: #{tpu_custom_call.1} parent=1 // pred_check
      _
    $region39: #{tpu_custom_call.1} parent=1 // pred_check_branch
      %121 = sbr.rel (0) target = $region41
    $region40: #{tpu_custom_call.1} parent=1 // pred_region
      %s123 = ssub.s32 16, 16
      %124 = vsyncadd [#allocation12], %s123
      %127 = dma.smem_to_hbm [#allocation11], 16, %s4, [#allocation12]
    $region41: #{tpu_custom_call.1} parent=1 // pred_fallthru
      _
    // Predicated region
    $region42: #{tpu_custom_call.1} parent=1 // pred_check
      _
    $region43: #{tpu_custom_call.1} parent=1 // pred_check_branch
      %129 = sbr.rel (0) target = $region45
    $region44: #{tpu_custom_call.1} parent=1 // pred_region
      %130 = dma.done [#allocation6], 16
    $region45: #{tpu_custom_call.1} parent=1 // pred_fallthru
      _
    // Predicated region
    $region46: #{tpu_custom_call.1} parent=1 // pred_check
      _
    $region47: #{tpu_custom_call.1} parent=1 // pred_check_branch
      %132 = sbr.rel (0) target = $region49
    $region48: #{tpu_custom_call.1} parent=1 // pred_region
      %133 = dma.done [#allocation12], 16
    $region49: #{tpu_custom_call.1} parent=1 // pred_fallthru
      _
    %134 = sfence
    %135 = vsyncpa [#allocation5], 1
    %136 = vsyncpa [#allocation8], 1
    %137 = vsyncpa [#allocation6], 1
    %138 = vsyncpa [#allocation12], 1

</llo_original>
